<compile_context>
chip_gen: v7x
topology: tpu7x:2x2x1
jax: 0.10.0
libtpu: 0.0.40
codegen_flags: <defaults>
</compile_context>

<pallas_src>
import jax
import jax.numpy as jnp
from jax.experimental import pallas as pl
from jax.experimental.pallas import tpu as pltpu

OUT_RAW = 10        # 5 torsion angles x (sin, cos)
OUT_PAD = 128       # lane-dense padded output width
VMEM_SOFT_CAP = 48 << 20   # shrink row tile if estimated usage exceeds this


def _round_up(x, m):
    return ((x + m - 1) // m) * m


def _pad2(a, rows, cols):
    r, c = a.shape
    return jnp.pad(a, ((0, rows - r), (0, cols - c)))


def _torsion_kernel(x_ref, w_in_ref, b_in_ref,
                    w0a_ref, b0a_ref, w0b_ref, b0b_ref,
                    w1a_ref, b1a_ref, w1b_ref, b1b_ref,
                    w_out_ref, b_out_ref, o_ref):
    """One row-tile of the full TorsionAnglePrediction forward."""
    mmd = w_in_ref.dtype     # matmul operand dtype (bf16 by default)

    # h = lin(x) + lin_ini(x_ini)  -- fused into a single matmul over K
    # (biases of lin / lin_ini pre-folded into b_in).
    h = (jnp.dot(x_ref[...], w_in_ref[...], preferred_element_type=jnp.float32)
         + b_in_ref[...])

    # h = h + mlp_0(h)   where mlp_0 = ReLU -> Linear -> ReLU -> Linear
    t = jnp.maximum(h, 0.0).astype(mmd)
    t = jnp.dot(t, w0a_ref[...], preferred_element_type=jnp.float32) + b0a_ref[...]
    t = jnp.maximum(t, 0.0).astype(mmd)
    t = jnp.dot(t, w0b_ref[...], preferred_element_type=jnp.float32) + b0b_ref[...]
    h = h + t

    # h = h + mlp_1(h)
    t = jnp.maximum(h, 0.0).astype(mmd)
    t = jnp.dot(t, w1a_ref[...], preferred_element_type=jnp.float32) + b1a_ref[...]
    t = jnp.maximum(t, 0.0).astype(mmd)
    t = jnp.dot(t, w1b_ref[...], preferred_element_type=jnp.float32) + b1b_ref[...]
    h = h + t

    # y = lin_out(relu(h))  -> (tm, OUT_PAD)   (lane-dense unmasked store)
    y = (jnp.dot(jnp.maximum(h, 0.0).astype(mmd), w_out_ref[...],
                 preferred_element_type=jnp.float32)
         + b_out_ref[...])
    o_ref[...] = y.astype(o_ref.dtype)


def torsion_angle_prediction(x, params, x_ini=None, *, tm=512,
                             matmul_dtype=jnp.bfloat16):
    """x, x_ini: (N, L, D) float32.  Returns (N, L, 5, 2) float32."""
    N, L, D = x.shape
    (w_lin, b_lin, w_lini, b_lini,
     w0a, b0a, w0b, b0b,
     w1a, b1a, w1b, b1b,
     w_out, b_out) = params

    has_ini = x_ini is not None
    M = N * L
    Dp = max(128, _round_up(D, 128))          # lane / MXU-K padding
    Kp = 2 * Dp if has_ini else Dp            # fused-input-projection K
    mmd = jnp.dtype(matmul_dtype)

    # Bytes of resident weights/biases (constant index map -> stay in VMEM).
    w_bytes = ((Kp * Dp + 4 * Dp * Dp + Dp * OUT_PAD) * mmd.itemsize
               + (5 * Dp + OUT_PAD) * 4)

    def _vmem_needed(t):
        # 2x weights (conservative double-buffer), double-buffered input tile,
        # double-buffered f32 output tile, plus headroom.
        return (2 * w_bytes
                + 2 * t * Kp * mmd.itemsize
                + 2 * t * OUT_PAD * 4
                + (1 << 20))

    # Row tile: as large as the VMEM budget allows, multiple of 8, <= padded M.
    tm_eff = min(tm, max(8, _round_up(M, 8)))
    while tm_eff > 64 and _vmem_needed(tm_eff) > VMEM_SOFT_CAP:
        tm_eff //= 2
    tm_eff = max(8, (tm_eff // 8) * 8)
    Mp = _round_up(M, tm_eff)

    # --- Build padded / cast operands -------------------------------------
    x2 = _pad2(x.reshape(M, D), Mp, Dp).astype(mmd)
    if has_ini:
        xi2 = _pad2(x_ini.reshape(M, D), Mp, Dp).astype(mmd)
        x_in = jnp.concatenate([x2, xi2], axis=1)                 # (Mp, 2*Dp)
        W_in = jnp.concatenate([_pad2(w_lin, Dp, Dp),
                                _pad2(w_lini, Dp, Dp)], axis=0).astype(mmd)
    else:
        # x_ini is None -> lin_ini contributes only its bias (folded below).
        x_in = x2
        W_in = _pad2(w_lin, Dp, Dp).astype(mmd)
    B_in = _pad2(b_lin + b_lini, 1, Dp)                           # folded bias

    W0a = _pad2(w0a, Dp, Dp).astype(mmd); B0a = _pad2(b0a, 1, Dp)
    W0b = _pad2(w0b, Dp, Dp).astype(mmd); B0b = _pad2(b0b, 1, Dp)
    W1a = _pad2(w1a, Dp, Dp).astype(mmd); B1a = _pad2(b1a, 1, Dp)
    W1b = _pad2(w1b, Dp, Dp).astype(mmd); B1b = _pad2(b1b, 1, Dp)
    W_out = _pad2(w_out, Dp, OUT_PAD).astype(mmd)                 # lane-dense
    B_out = _pad2(b_out, 1, OUT_PAD)

    operands = (x_in, W_in, B_in,
                W0a, B0a, W0b, B0b,
                W1a, B1a, W1b, B1b,
                W_out, B_out)

    # --- BlockSpecs ---------------------------------------------------------
    row_spec = pl.BlockSpec((tm_eff, Kp), lambda i: (i, 0))
    full2d = lambda shape: pl.BlockSpec(shape, lambda i: (0, 0))
    wspec, bspec = full2d((Dp, Dp)), full2d((1, Dp))
    in_specs = [row_spec,
                full2d((Kp, Dp)), bspec,
                wspec, bspec, wspec, bspec,
                wspec, bspec, wspec, bspec,
                full2d((Dp, OUT_PAD)), full2d((1, OUT_PAD))]

    # --- Cost estimate & VMEM limit ----------------------------------------
    flops = 2 * Mp * (Kp * Dp + 4 * Dp * Dp + Dp * OUT_PAD)
    bytes_accessed = (Mp * Kp * mmd.itemsize + w_bytes + Mp * OUT_PAD * 4)
    vmem_limit = int(min(64 << 20, max(32 << 20, 2 * _vmem_needed(tm_eff))))

    out = pl.pallas_call(
        _torsion_kernel,
        out_shape=jax.ShapeDtypeStruct((Mp, OUT_PAD), jnp.float32),
        grid_spec=pltpu.PrefetchScalarGridSpec(
            num_scalar_prefetch=0,
            grid=(Mp // tm_eff,),
            in_specs=in_specs,
            out_specs=pl.BlockSpec((tm_eff, OUT_PAD), lambda i: (i, 0)),
        ),
        compiler_params=pltpu.CompilerParams(
            dimension_semantics=("parallel",),
            vmem_limit_bytes=vmem_limit),
        cost_estimate=pl.CostEstimate(
            flops=int(flops), transcendentals=0,
            bytes_accessed=int(bytes_accessed)),
    )(*operands)

    return out[:M, :OUT_RAW].reshape(N, L, 5, 2)


def init_params(key, feat_dim):
    """Deterministic synthetic parameters. Weights stored (in, out), biases (1, out)."""
    ks = jax.random.split(key, 14)
    D = feat_dim
    scale = 1.0 / jnp.sqrt(D)

    def w(k, din, dout):
        return jax.random.uniform(k, (din, dout), jnp.float32, -scale, scale)

    def b(k, dout):
        return jax.random.uniform(k, (1, dout), jnp.float32, -scale, scale)

    return (
        w(ks[0], D, D),  b(ks[1], D),      # lin
        w(ks[2], D, D),  b(ks[3], D),      # lin_ini
        w(ks[4], D, D),  b(ks[5], D),      # mlp_0 linear 1
        w(ks[6], D, D),  b(ks[7], D),      # mlp_0 linear 2
        w(ks[8], D, D),  b(ks[9], D),      # mlp_1 linear 1
        w(ks[10], D, D), b(ks[11], D),     # mlp_1 linear 2
        w(ks[12], D, 10), b(ks[13], 10),   # lin_out
    )


def _reference(x, params, x_ini, matmul_dtype=jnp.float32):
    """Pure-JAX reference mirroring the PyTorch forward.

    matmul_dtype lets us build a numerics-matched reference for the bf16
    kernel (cast matmul operands, accumulate f32, keep biases/ReLU in f32).
    """
    (w_lin, b_lin, w_lini, b_lini,
     w0a, b0a, w0b, b0b,
     w1a, b1a, w1b, b1b,
     w_out, b_out) = params
    md = matmul_dtype
    mm = lambda a, w: jnp.dot(a.astype(md), w.astype(md),
                              preferred_element_type=jnp.float32)
    relu = lambda v: jnp.maximum(v, 0.0)

    h = mm(x, w_lin) + mm(x_ini, w_lini) + (b_lin + b_lini)
    h = h + (mm(relu(mm(relu(h), w0a) + b0a), w0b) + b0b)
    h = h + (mm(relu(mm(relu(h), w1a) + b1a), w1b) + b1b)
    y = mm(relu(h), w_out) + b_out
    N, L, _ = x.shape
    return y.reshape(N, L, 5, 2)


if __name__ == "__main__":
    key = jax.random.PRNGKey(0)
    k_p, k_x, k_xi = jax.random.split(key, 3)

    N, L, feat_dim = 2, 8, 32  # M = N*L = 16 rows (small demo shapes)
    params = init_params(k_p, feat_dim)
    x = jax.random.normal(k_x, (N, L, feat_dim), jnp.float32)
    x_ini = jax.random.normal(k_xi, (N, L, feat_dim), jnp.float32)

    # Main path (x_ini provided), bf16 matmuls with f32 accumulation.
    y = jax.block_until_ready(torsion_angle_prediction(x, params, x_ini))
    assert y.shape == (N, L, 5, 2)

    y_ref_bf16 = _reference(x, params, x_ini, matmul_dtype=jnp.bfloat16)
    y_ref_f32 = _reference(x, params, x_ini, matmul_dtype=jnp.float32)
    assert jnp.allclose(y, y_ref_bf16, atol=1e-2, rtol=1e-2), "bf16-matched mismatch"
    assert jnp.allclose(y, y_ref_f32, atol=1e-1, rtol=1e-1), "f32 semantic drift"

    # Fast path: x_ini is None (single-width input projection, no x_ini stream).
    y0 = jax.block_until_ready(torsion_angle_prediction(x, params, None))
    y0_ref = _reference(x, params, jnp.zeros_like(x), matmul_dtype=jnp.bfloat16)
    assert jnp.allclose(y0, y0_ref, atol=1e-2, rtol=1e-2), "no-ini path mismatch"

    print("KERNEL_OK")
</pallas_src>

<mosaic_0001>
module attributes {stable_mosaic.version = 11 : i64} {
  func.func @_torsion_kernel(%arg0: i32, %arg1: memref<16x256xbf16, #tpu.memory_space<vmem>>, %arg2: memref<256x128xbf16, #tpu.memory_space<vmem>>, %arg3: memref<1x128xf32, #tpu.memory_space<vmem>>, %arg4: memref<128x128xbf16, #tpu.memory_space<vmem>>, %arg5: memref<1x128xf32, #tpu.memory_space<vmem>>, %arg6: memref<128x128xbf16, #tpu.memory_space<vmem>>, %arg7: memref<1x128xf32, #tpu.memory_space<vmem>>, %arg8: memref<128x128xbf16, #tpu.memory_space<vmem>>, %arg9: memref<1x128xf32, #tpu.memory_space<vmem>>, %arg10: memref<128x128xbf16, #tpu.memory_space<vmem>>, %arg11: memref<1x128xf32, #tpu.memory_space<vmem>>, %arg12: memref<128x128xbf16, #tpu.memory_space<vmem>>, %arg13: memref<1x128xf32, #tpu.memory_space<vmem>>, %arg14: memref<16x128xf32, #tpu.memory_space<vmem>>) attributes {dimension_semantics = [#tpu.dimension_semantics<parallel>], iteration_bounds = array<i64: 1>, scalar_prefetch = 0 : i64, scratch_operands = 0 : i64, tpu.core_type = #tpu.core_type<tc>, window_params = [{transform_indices = @transform_0, window_bounds = array<i64: 16, 256>}, {pipeline_mode = #tpu.pipeline_mode<synchronous>, transform_indices = @transform_1, window_bounds = array<i64: 256, 128>}, {pipeline_mode = #tpu.pipeline_mode<synchronous>, transform_indices = @transform_2, window_bounds = array<i64: 1, 128>}, {pipeline_mode = #tpu.pipeline_mode<synchronous>, transform_indices = @transform_3, window_bounds = array<i64: 128, 128>}, {pipeline_mode = #tpu.pipeline_mode<synchronous>, transform_indices = @transform_4, window_bounds = array<i64: 1, 128>}, {pipeline_mode = #tpu.pipeline_mode<synchronous>, transform_indices = @transform_5, window_bounds = array<i64: 128, 128>}, {pipeline_mode = #tpu.pipeline_mode<synchronous>, transform_indices = @transform_6, window_bounds = array<i64: 1, 128>}, {pipeline_mode = #tpu.pipeline_mode<synchronous>, transform_indices = @transform_7, window_bounds = array<i64: 128, 128>}, {pipeline_mode = #tpu.pipeline_mode<synchronous>, transform_indices = @transform_8, window_bounds = array<i64: 1, 128>}, {pipeline_mode = #tpu.pipeline_mode<synchronous>, transform_indices = @transform_9, window_bounds = array<i64: 128, 128>}, {pipeline_mode = #tpu.pipeline_mode<synchronous>, transform_indices = @transform_10, window_bounds = array<i64: 1, 128>}, {pipeline_mode = #tpu.pipeline_mode<synchronous>, transform_indices = @transform_11, window_bounds = array<i64: 128, 128>}, {pipeline_mode = #tpu.pipeline_mode<synchronous>, transform_indices = @transform_12, window_bounds = array<i64: 1, 128>}, {transform_indices = @transform_13, window_bounds = array<i64: 16, 128>}]} {
    %c0 = arith.constant 0 : index
    %c0_0 = arith.constant 0 : index
    %0 = vector.load %arg1[%c0, %c0_0] : memref<16x256xbf16, #tpu.memory_space<vmem>>, vector<16x256xbf16>
    %c0_1 = arith.constant 0 : index
    %c0_2 = arith.constant 0 : index
    %1 = vector.load %arg2[%c0_1, %c0_2] : memref<256x128xbf16, #tpu.memory_space<vmem>>, vector<256x128xbf16>
    %cst = arith.constant dense<0.000000e+00> : vector<16x128xf32>
    %2 = tpu.matmul %0, %1, %cst {dimension_numbers = #tpu.dot_dimension_numbers<[1], [0], [0], [1], [0, 0, 1, 1], [], []>} : vector<16x256xbf16>, vector<256x128xbf16>, vector<16x128xf32> -> vector<16x128xf32>
    %c0_3 = arith.constant 0 : index
    %c0_4 = arith.constant 0 : index
    %3 = vector.load %arg3[%c0_3, %c0_4] : memref<1x128xf32, #tpu.memory_space<vmem>>, vector<1x128xf32>
    %4 = vector.broadcast %3 : vector<1x128xf32> to vector<16x128xf32>
    %5 = arith.addf %2, %4 : vector<16x128xf32>
    %cst_5 = arith.constant 0.000000e+00 : f32
    %6 = vector.broadcast %cst_5 : f32 to vector<16x128xf32>
    %7 = arith.maximumf %5, %6 : vector<16x128xf32>
    %8 = arith.truncf %7 : vector<16x128xf32> to vector<16x128xbf16>
    %c0_6 = arith.constant 0 : index
    %c0_7 = arith.constant 0 : index
    %9 = vector.load %arg4[%c0_6, %c0_7] : memref<128x128xbf16, #tpu.memory_space<vmem>>, vector<128x128xbf16>
    %cst_8 = arith.constant dense<0.000000e+00> : vector<16x128xf32>
    %10 = tpu.matmul %8, %9, %cst_8 {dimension_numbers = #tpu.dot_dimension_numbers<[1], [0], [0], [1], [0, 0, 1, 1], [], []>} : vector<16x128xbf16>, vector<128x128xbf16>, vector<16x128xf32> -> vector<16x128xf32>
    %c0_9 = arith.constant 0 : index
    %c0_10 = arith.constant 0 : index
    %11 = vector.load %arg5[%c0_9, %c0_10] : memref<1x128xf32, #tpu.memory_space<vmem>>, vector<1x128xf32>
    %12 = vector.broadcast %11 : vector<1x128xf32> to vector<16x128xf32>
    %13 = arith.addf %10, %12 : vector<16x128xf32>
    %cst_11 = arith.constant 0.000000e+00 : f32
    %14 = vector.broadcast %cst_11 : f32 to vector<16x128xf32>
    %15 = arith.maximumf %13, %14 : vector<16x128xf32>
    %16 = arith.truncf %15 : vector<16x128xf32> to vector<16x128xbf16>
    %c0_12 = arith.constant 0 : index
    %c0_13 = arith.constant 0 : index
    %17 = vector.load %arg6[%c0_12, %c0_13] : memref<128x128xbf16, #tpu.memory_space<vmem>>, vector<128x128xbf16>
    %cst_14 = arith.constant dense<0.000000e+00> : vector<16x128xf32>
    %18 = tpu.matmul %16, %17, %cst_14 {dimension_numbers = #tpu.dot_dimension_numbers<[1], [0], [0], [1], [0, 0, 1, 1], [], []>} : vector<16x128xbf16>, vector<128x128xbf16>, vector<16x128xf32> -> vector<16x128xf32>
    %c0_15 = arith.constant 0 : index
    %c0_16 = arith.constant 0 : index
    %19 = vector.load %arg7[%c0_15, %c0_16] : memref<1x128xf32, #tpu.memory_space<vmem>>, vector<1x128xf32>
    %20 = vector.broadcast %19 : vector<1x128xf32> to vector<16x128xf32>
    %21 = arith.addf %18, %20 : vector<16x128xf32>
    %22 = arith.addf %5, %21 : vector<16x128xf32>
    %cst_17 = arith.constant 0.000000e+00 : f32
    %23 = vector.broadcast %cst_17 : f32 to vector<16x128xf32>
    %24 = arith.maximumf %22, %23 : vector<16x128xf32>
    %25 = arith.truncf %24 : vector<16x128xf32> to vector<16x128xbf16>
    %c0_18 = arith.constant 0 : index
    %c0_19 = arith.constant 0 : index
    %26 = vector.load %arg8[%c0_18, %c0_19] : memref<128x128xbf16, #tpu.memory_space<vmem>>, vector<128x128xbf16>
    %cst_20 = arith.constant dense<0.000000e+00> : vector<16x128xf32>
    %27 = tpu.matmul %25, %26, %cst_20 {dimension_numbers = #tpu.dot_dimension_numbers<[1], [0], [0], [1], [0, 0, 1, 1], [], []>} : vector<16x128xbf16>, vector<128x128xbf16>, vector<16x128xf32> -> vector<16x128xf32>
    %c0_21 = arith.constant 0 : index
    %c0_22 = arith.constant 0 : index
    %28 = vector.load %arg9[%c0_21, %c0_22] : memref<1x128xf32, #tpu.memory_space<vmem>>, vector<1x128xf32>
    %29 = vector.broadcast %28 : vector<1x128xf32> to vector<16x128xf32>
    %30 = arith.addf %27, %29 : vector<16x128xf32>
    %cst_23 = arith.constant 0.000000e+00 : f32
    %31 = vector.broadcast %cst_23 : f32 to vector<16x128xf32>
    %32 = arith.maximumf %30, %31 : vector<16x128xf32>
    %33 = arith.truncf %32 : vector<16x128xf32> to vector<16x128xbf16>
    %c0_24 = arith.constant 0 : index
    %c0_25 = arith.constant 0 : index
    %34 = vector.load %arg10[%c0_24, %c0_25] : memref<128x128xbf16, #tpu.memory_space<vmem>>, vector<128x128xbf16>
    %cst_26 = arith.constant dense<0.000000e+00> : vector<16x128xf32>
    %35 = tpu.matmul %33, %34, %cst_26 {dimension_numbers = #tpu.dot_dimension_numbers<[1], [0], [0], [1], [0, 0, 1, 1], [], []>} : vector<16x128xbf16>, vector<128x128xbf16>, vector<16x128xf32> -> vector<16x128xf32>
    %c0_27 = arith.constant 0 : index
    %c0_28 = arith.constant 0 : index
    %36 = vector.load %arg11[%c0_27, %c0_28] : memref<1x128xf32, #tpu.memory_space<vmem>>, vector<1x128xf32>
    %37 = vector.broadcast %36 : vector<1x128xf32> to vector<16x128xf32>
    %38 = arith.addf %35, %37 : vector<16x128xf32>
    %39 = arith.addf %22, %38 : vector<16x128xf32>
    %cst_29 = arith.constant 0.000000e+00 : f32
    %40 = vector.broadcast %cst_29 : f32 to vector<16x128xf32>
    %41 = arith.maximumf %39, %40 : vector<16x128xf32>
    %42 = arith.truncf %41 : vector<16x128xf32> to vector<16x128xbf16>
    %c0_30 = arith.constant 0 : index
    %c0_31 = arith.constant 0 : index
    %43 = vector.load %arg12[%c0_30, %c0_31] : memref<128x128xbf16, #tpu.memory_space<vmem>>, vector<128x128xbf16>
    %cst_32 = arith.constant dense<0.000000e+00> : vector<16x128xf32>
    %44 = tpu.matmul %42, %43, %cst_32 {dimension_numbers = #tpu.dot_dimension_numbers<[1], [0], [0], [1], [0, 0, 1, 1], [], []>} : vector<16x128xbf16>, vector<128x128xbf16>, vector<16x128xf32> -> vector<16x128xf32>
    %c0_33 = arith.constant 0 : index
    %c0_34 = arith.constant 0 : index
    %45 = vector.load %arg13[%c0_33, %c0_34] : memref<1x128xf32, #tpu.memory_space<vmem>>, vector<1x128xf32>
    %46 = vector.broadcast %45 : vector<1x128xf32> to vector<16x128xf32>
    %47 = arith.addf %44, %46 : vector<16x128xf32>
    %c0_35 = arith.constant 0 : index
    %c0_36 = arith.constant 0 : index
    %48 = vector.load %arg14[%c0_35, %c0_36] : memref<16x128xf32, #tpu.memory_space<vmem>>, vector<16x128xf32>
    tpu.vector_store %arg14[%c0_35, %c0_36], %47 {strides = array<i32>} : memref<16x128xf32, #tpu.memory_space<vmem>>, vector<16x128xf32>,
    return
  }
  func.func @transform_0(%arg0: i32) -> (i32, i32) {
    %c0_i32 = arith.constant 0 : i32
    %c0_i32_0 = arith.constant 0 : i32
    return %arg0, %c0_i32 : i32, i32
  }
  func.func @transform_1(%arg0: i32) -> (i32, i32) {
    %c0_i32 = arith.constant 0 : i32
    %c0_i32_0 = arith.constant 0 : i32
    %c0_i32_1 = arith.constant 0 : i32
    return %c0_i32, %c0_i32_0 : i32, i32
  }
  func.func @transform_2(%arg0: i32) -> (i32, i32) {
    %c0_i32 = arith.constant 0 : i32
    %c0_i32_0 = arith.constant 0 : i32
    %c0_i32_1 = arith.constant 0 : i32
    return %c0_i32, %c0_i32_0 : i32, i32
  }
  func.func @transform_3(%arg0: i32) -> (i32, i32) {
    %c0_i32 = arith.constant 0 : i32
    %c0_i32_0 = arith.constant 0 : i32
    %c0_i32_1 = arith.constant 0 : i32
    return %c0_i32, %c0_i32_0 : i32, i32
  }
  func.func @transform_4(%arg0: i32) -> (i32, i32) {
    %c0_i32 = arith.constant 0 : i32
    %c0_i32_0 = arith.constant 0 : i32
    %c0_i32_1 = arith.constant 0 : i32
    return %c0_i32, %c0_i32_0 : i32, i32
  }
  func.func @transform_5(%arg0: i32) -> (i32, i32) {
    %c0_i32 = arith.constant 0 : i32
    %c0_i32_0 = arith.constant 0 : i32
    %c0_i32_1 = arith.constant 0 : i32
    return %c0_i32, %c0_i32_0 : i32, i32
  }
  func.func @transform_6(%arg0: i32) -> (i32, i32) {
    %c0_i32 = arith.constant 0 : i32
    %c0_i32_0 = arith.constant 0 : i32
    %c0_i32_1 = arith.constant 0 : i32
    return %c0_i32, %c0_i32_0 : i32, i32
  }
  func.func @transform_7(%arg0: i32) -> (i32, i32) {
    %c0_i32 = arith.constant 0 : i32
    %c0_i32_0 = arith.constant 0 : i32
    %c0_i32_1 = arith.constant 0 : i32
    return %c0_i32, %c0_i32_0 : i32, i32
  }
  func.func @transform_8(%arg0: i32) -> (i32, i32) {
    %c0_i32 = arith.constant 0 : i32
    %c0_i32_0 = arith.constant 0 : i32
    %c0_i32_1 = arith.constant 0 : i32
    return %c0_i32, %c0_i32_0 : i32, i32
  }
  func.func @transform_9(%arg0: i32) -> (i32, i32) {
    %c0_i32 = arith.constant 0 : i32
    %c0_i32_0 = arith.constant 0 : i32
    %c0_i32_1 = arith.constant 0 : i32
    return %c0_i32, %c0_i32_0 : i32, i32
  }
  func.func @transform_10(%arg0: i32) -> (i32, i32) {
    %c0_i32 = arith.constant 0 : i32
    %c0_i32_0 = arith.constant 0 : i32
    %c0_i32_1 = arith.constant 0 : i32
    return %c0_i32, %c0_i32_0 : i32, i32
  }
  func.func @transform_11(%arg0: i32) -> (i32, i32) {
    %c0_i32 = arith.constant 0 : i32
    %c0_i32_0 = arith.constant 0 : i32
    %c0_i32_1 = arith.constant 0 : i32
    return %c0_i32, %c0_i32_0 : i32, i32
  }
  func.func @transform_12(%arg0: i32) -> (i32, i32) {
    %c0_i32 = arith.constant 0 : i32
    %c0_i32_0 = arith.constant 0 : i32
    %c0_i32_1 = arith.constant 0 : i32
    return %c0_i32, %c0_i32_0 : i32, i32
  }
  func.func @transform_13(%arg0: i32) -> (i32, i32) {
    %c0_i32 = arith.constant 0 : i32
    %c0_i32_0 = arith.constant 0 : i32
    return %arg0, %c0_i32 : i32, i32
  }
}

</mosaic_0001>

<llo_original>
// kernel: tpu_custom_call.1
$region0: #{tpu_custom_call.1}
  #allocation0 [shape = 'u32[]', space=smem, size = 0x4, offset = 0x4, fixed_abs, tag = 'smem constant byte address 0x4 - core index']
  #allocation1 [shape = 'u32[144,128]{1,0:T(1,128)}', space=vmem, size = 0x12000, scoped, tag = 'internal scratch']
  %s0 = inlined_call_operand.hbm [shape: bf16[16,256], index: 0, kind: input, shape index: {}]
  %s1 = inlined_call_operand.hbm [shape: bf16[256,128], index: 1, kind: input, shape index: {}]
  %s2 = inlined_call_operand.vmem [shape: f32[1,128], index: 2, kind: input, shape index: {}]
  %s3 = inlined_call_operand.hbm [shape: bf16[128,128], index: 3, kind: input, shape index: {}]
  %s4 = inlined_call_operand.vmem [shape: f32[1,128], index: 4, kind: input, shape index: {}]
  %s5 = inlined_call_operand.hbm [shape: bf16[128,128], index: 5, kind: input, shape index: {}]
  %s6 = inlined_call_operand.vmem [shape: f32[1,128], index: 6, kind: input, shape index: {}]
  %s7 = inlined_call_operand.hbm [shape: bf16[128,128], index: 7, kind: input, shape index: {}]
  %s8 = inlined_call_operand.vmem [shape: f32[1,128], index: 8, kind: input, shape index: {}]
  %s9 = inlined_call_operand.hbm [shape: bf16[128,128], index: 9, kind: input, shape index: {}]
  %s10 = inlined_call_operand.vmem [shape: f32[1,128], index: 10, kind: input, shape index: {}]
  %s11 = inlined_call_operand.hbm [shape: bf16[128,128], index: 11, kind: input, shape index: {}]
  %s12 = inlined_call_operand.vmem [shape: f32[1,128], index: 12, kind: input, shape index: {}]
  %s13 = inlined_call_operand.hbm [shape: f32[16,128], index: 13, kind: output, shape index: {}]
  %s14 = sld [smem:[#allocation0]]
  $region90: #{tpu_custom_call.1} parent=0
    _
  %s16 = ssub.s32 1, %s14
  %s17 = scalar_select 0, %s16, %s14
  $region1: #{tpu_custom_call.1} parent=0
    #allocation2 [shape = 'u8[8192]{0}', space=vmem, size = 0x2000, scoped, tag = 'input window, operand 0, single buffered']
    #allocation3 [shape = 's32[1]{0}', space=sflag, size = 0x4, scoped, tag = 'scoped memory for tpu_custom_call.1']
    #allocation4 [shape = 's32[1]{0}', space=sflag, size = 0x4, scoped, tag = 'scoped memory for tpu_custom_call.1']
    #allocation5 [shape = 'u8[65536]{0}', space=vmem, size = 0x10000, scoped, tag = 'input window, operand 1, single buffered']
    #allocation6 [shape = 's32[1]{0}', space=sflag, size = 0x4, scoped, tag = 'scoped memory for tpu_custom_call.1']
    #allocation7 [shape = 'u8[32768]{0}', space=vmem, size = 0x8000, scoped, tag = 'input window, operand 3, single buffered']
    #allocation8 [shape = 'u8[32768]{0}', space=vmem, size = 0x8000, scoped, tag = 'input window, operand 5, single buffered']
    #allocation9 [shape = 's32[1]{0}', space=sflag, size = 0x4, scoped, tag = 'scoped memory for tpu_custom_call.1']
    #allocation10 [shape = 'u8[32768]{0}', space=vmem, size = 0x8000, scoped, tag = 'input window, operand 7, single buffered']
    #allocation11 [shape = 'u8[32768]{0}', space=vmem, size = 0x8000, scoped, tag = 'input window, operand 9, single buffered']
    #allocation12 [shape = 's32[1]{0}', space=sflag, size = 0x4, scoped, tag = 'scoped memory for tpu_custom_call.1']
    #allocation13 [shape = 'u8[32768]{0}', space=vmem, size = 0x8000, scoped, tag = 'input window, operand 11, single buffered']
    #allocation14 [shape = 'u8[8192]{0}', space=vmem, size = 0x2000, scoped, tag = 'output window, operand 0, single buffered']
    %18 = vsyncpa [#allocation3], 0
    %19 = vsyncpa [#allocation6], 0
    %20 = vsyncpa [#allocation9], 0
    %21 = vsyncpa [#allocation12], 0
    %22 = vsyncpa [#allocation4], 0
    // Predicated region
    $region2: #{tpu_custom_call.1} parent=1 // pred_check
      _
    $region3: #{tpu_custom_call.1} parent=1 // pred_check_branch
      %24 = sbr.rel (0) target = $region5
    $region4: #{tpu_custom_call.1} parent=1 // pred_region
      %s26 = ssub.s32 256, 256
      %27 = vsyncadd [#allocation3], %s26
      %s28 = sshll.u32 [#allocation2], 4
      %s29 = int_to_ptr.vmem [resolvable:$true] %s28
      %34 = dma.hbm_to_vmem [thread:$0]  %s0, 256, %s29, [#allocation3], 128, 128, 8
    $region5: #{tpu_custom_call.1} parent=1 // pred_fallthru
      _
    // Predicated region
    $region6: #{tpu_custom_call.1} parent=1 // pred_check
      _
    $region7: #{tpu_custom_call.1} parent=1 // pred_check_branch
      %36 = sbr.rel (0) target = $region9
    $region8: #{tpu_custom_call.1} parent=1 // pred_region
      %s38 = ssub.s32 2048, 2048
      %39 = vsyncadd [#allocation6], %s38
      %s40 = sshll.u32 [#allocation5], 4
      %s41 = int_to_ptr.vmem [resolvable:$true] %s40
      %46 = dma.hbm_to_vmem [thread:$0]  %s1, 2048, %s41, [#allocation6], 64, 64, 4
    $region9: #{tpu_custom_call.1} parent=1 // pred_fallthru
      _
    // Predicated region
    $region10: #{tpu_custom_call.1} parent=1 // pred_check
      _
    $region11: #{tpu_custom_call.1} parent=1 // pred_check_branch
      %48 = sbr.rel (0) target = $region13
    $region12: #{tpu_custom_call.1} parent=1 // pred_region
      _
    $region13: #{tpu_custom_call.1} parent=1 // pred_fallthru
      _
    // Predicated region
    $region14: #{tpu_custom_call.1} parent=1 // pred_check
      _
    $region15: #{tpu_custom_call.1} parent=1 // pred_check_branch
      %50 = sbr.rel (0) target = $region17
    $region16: #{tpu_custom_call.1} parent=1 // pred_region
      %s52 = ssub.s32 1024, 1024
      %53 = vsyncadd [#allocation6], %s52
      %s54 = sshll.u32 [#allocation7], 4
      %s55 = int_to_ptr.vmem [resolvable:$true] %s54
      %60 = dma.hbm_to_vmem [thread:$0]  %s3, 1024, %s55, [#allocation6], 64, 64, 4
    $region17: #{tpu_custom_call.1} parent=1 // pred_fallthru
      _
    // Predicated region
    $region18: #{tpu_custom_call.1} parent=1 // pred_check
      _
    $region19: #{tpu_custom_call.1} parent=1 // pred_check_branch
      %62 = sbr.rel (0) target = $region21
    $region20: #{tpu_custom_call.1} parent=1 // pred_region
      _
    $region21: #{tpu_custom_call.1} parent=1 // pred_fallthru
      _
    // Predicated region
    $region22: #{tpu_custom_call.1} parent=1 // pred_check
      _
    $region23: #{tpu_custom_call.1} parent=1 // pred_check_branch
      %64 = sbr.rel (0) target = $region25
    $region24: #{tpu_custom_call.1} parent=1 // pred_region
      %s66 = ssub.s32 1024, 1024
      %67 = vsyncadd [#allocation9], %s66
      %s68 = sshll.u32 [#allocation8], 4
      %s69 = int_to_ptr.vmem [resolvable:$true] %s68
      %74 = dma.hbm_to_vmem [thread:$0]  %s5, 1024, %s69, [#allocation9], 64, 64, 4
    $region25: #{tpu_custom_call.1} parent=1 // pred_fallthru
      _
    // Predicated region
    $region26: #{tpu_custom_call.1} parent=1 // pred_check
      _
    $region27: #{tpu_custom_call.1} parent=1 // pred_check_branch
      %76 = sbr.rel (0) target = $region29
    $region28: #{tpu_custom_call.1} parent=1 // pred_region
      _
    $region29: #{tpu_custom_call.1} parent=1 // pred_fallthru
      _
    // Predicated region
    $region30: #{tpu_custom_call.1} parent=1 // pred_check
      _
    $region31: #{tpu_custom_call.1} parent=1 // pred_check_branch
      %78 = sbr.rel (0) target = $region33
    $region32: #{tpu_custom_call.1} parent=1 // pred_region
      %s80 = ssub.s32 1024, 1024
      %81 = vsyncadd [#allocation9], %s80
      %s82 = sshll.u32 [#allocation10], 4
      %s83 = int_to_ptr.vmem [resolvable:$true] %s82
      %88 = dma.hbm_to_vmem [thread:$0]  %s7, 1024, %s83, [#allocation9], 64, 64, 4
    $region33: #{tpu_custom_call.1} parent=1 // pred_fallthru
      _
    // Predicated region
    $region34: #{tpu_custom_call.1} parent=1 // pred_check
      _
    $region35: #{tpu_custom_call.1} parent=1 // pred_check_branch
      %90 = sbr.rel (0) target = $region37
    $region36: #{tpu_custom_call.1} parent=1 // pred_region
      _
    $region37: #{tpu_custom_call.1} parent=1 // pred_fallthru
      _
    // Predicated region
    $region38: #{tpu_custom_call.1} parent=1 // pred_check
      _
    $region39: #{tpu_custom_call.1} parent=1 // pred_check_branch
      %92 = sbr.rel (0) target = $region41
    $region40: #{tpu_custom_call.1} parent=1 // pred_region
      %s94 = ssub.s32 1024, 1024
      %95 = vsyncadd [#allocation12], %s94
      %s96 = sshll.u32 [#allocation11], 4
      %s97 = int_to_ptr.vmem [resolvable:$true] %s96
      %102 = dma.hbm_to_vmem [thread:$0]  %s9, 1024, %s97, [#allocation12], 64, 64, 4
    $region41: #{tpu_custom_call.1} parent=1 // pred_fallthru
      _
    // Predicated region
    $region42: #{tpu_custom_call.1} parent=1 // pred_check
      _
    $region43: #{tpu_custom_call.1} parent=1 // pred_check_branch
      %104 = sbr.rel (0) target = $region45
    $region44: #{tpu_custom_call.1} parent=1 // pred_region
      _
    $region45: #{tpu_custom_call.1} parent=1 // pred_fallthru
      _
    // Predicated region
    $region46: #{tpu_custom_call.1} parent=1 // pred_check
      _
    $region47: #{tpu_custom_call.1} parent=1 // pred_check_branch
      %106 = sbr.rel (0) target = $region49
    $region48: #{tpu_custom_call.1} parent=1 // pred_region
      %s108 = ssub.s32 1024, 1024
      %109 = vsyncadd [#allocation12], %s108
      %s110 = sshll.u32 [#allocation13], 4
      %s111 = int_to_ptr.vmem [resolvable:$true] %s110
      %116 = dma.hbm_to_vmem [thread:$0]  %s11, 1024, %s111, [#allocation12], 64, 64, 4
    $region49: #{tpu_custom_call.1} parent=1 // pred_fallthru
      _
    // Predicated region
    $region50: #{tpu_custom_call.1} parent=1 // pred_check
      _
    $region51: #{tpu_custom_call.1} parent=1 // pred_check_branch
      %118 = sbr.rel (0) target = $region53
    $region52: #{tpu_custom_call.1} parent=1 // pred_region
      _
    $region53: #{tpu_custom_call.1} parent=1 // pred_fallthru
      _
    // Predicated region
    $region54: #{tpu_custom_call.1} parent=1 // pred_check
      _
    $region55: #{tpu_custom_call.1} parent=1 // pred_check_branch
      %120 = sbr.rel (0) target = $region57
    $region56: #{tpu_custom_call.1} parent=1 // pred_region
      %121 = dma.done [#allocation3], 256
    $region57: #{tpu_custom_call.1} parent=1 // pred_fallthru
      _
    // Predicated region
    $region58: #{tpu_custom_call.1} parent=1 // pred_check
      _
    $region59: #{tpu_custom_call.1} parent=1 // pred_check_branch
      %123 = sbr.rel (0) target = $region61
    $region60: #{tpu_custom_call.1} parent=1 // pred_region
      %124 = dma.done [#allocation6], 2048
    $region61: #{tpu_custom_call.1} parent=1 // pred_fallthru
      _
    // Predicated region
    $region62: #{tpu_custom_call.1} parent=1 // pred_check
      _
    $region63: #{tpu_custom_call.1} parent=1 // pred_check_branch
      %126 = sbr.rel (0) target = $region65
    $region64: #{tpu_custom_call.1} parent=1 // pred_region
      %127 = dma.done [#allocation6], 1024
    $region65: #{tpu_custom_call.1} parent=1 // pred_fallthru
      _
    // Predicated region
    $region66: #{tpu_custom_call.1} parent=1 // pred_check
      _
    $region67: #{tpu_custom_call.1} parent=1 // pred_check_branch
      %129 = sbr.rel (0) target = $region69
    $region68: #{tpu_custom_call.1} parent=1 // pred_region
      %130 = dma.done [#allocation9], 1024
    $region69: #{tpu_custom_call.1} parent=1 // pred_fallthru
      _
    // Predicated region
    $region70: #{tpu_custom_call.1} parent=1 // pred_check
      _
    $region71: #{tpu_custom_call.1} parent=1 // pred_check_branch
      %132 = sbr.rel (0) target = $region73
    $region72: #{tpu_custom_call.1} parent=1 // pred_region
      %133 = dma.done [#allocation9], 1024
    $region73: #{tpu_custom_call.1} parent=1 // pred_fallthru
      _
    // Predicated region
    $region74: #{tpu_custom_call.1} parent=1 // pred_check
      _
    $region75: #{tpu_custom_call.1} parent=1 // pred_check_branch
      %135 = sbr.rel (0) target = $region77
    $region76: #{tpu_custom_call.1} parent=1 // pred_region
      %136 = dma.done [#allocation12], 1024
    $region77: #{tpu_custom_call.1} parent=1 // pred_fallthru
      _
    // Predicated region
    $region78: #{tpu_custom_call.1} parent=1 // pred_check
      _
    $region79: #{tpu_custom_call.1} parent=1 // pred_check_branch
      %138 = sbr.rel (0) target = $region81
    $region80: #{tpu_custom_call.1} parent=1 // pred_region
      %139 = dma.done [#allocation12], 1024
    $region81: #{tpu_custom_call.1} parent=1 // pred_fallthru
      _
    %v141 = vld [vmem:[#allocation2] sm:$0xff]
    %v142 = vld [vmem:[#allocation2 + $0x8] sm:$0xff]
    %v143 = vld [vmem:[#allocation5] sm:$0xf]
    %v144 = vld [vmem:[#allocation5 + $0x4] sm:$0xf]
    %v145 = vld [vmem:[#allocation5 + $0x8] sm:$0xf]
    %v146 = vld [vmem:[#allocation5 + $0xc] sm:$0xf]
    %v147 = vld [vmem:[#allocation5 + $0x10] sm:$0xf]
    %v148 = vld [vmem:[#allocation5 + $0x14] sm:$0xf]
    %v149 = vld [vmem:[#allocation5 + $0x18] sm:$0xf]
    %v150 = vld [vmem:[#allocation5 + $0x1c] sm:$0xf]
    %v151 = vld [vmem:[#allocation5 + $0x20] sm:$0xf]
    %v152 = vld [vmem:[#allocation5 + $0x24] sm:$0xf]
    %v153 = vld [vmem:[#allocation5 + $0x28] sm:$0xf]
    %v154 = vld [vmem:[#allocation5 + $0x2c] sm:$0xf]
    %v155 = vld [vmem:[#allocation5 + $0x30] sm:$0xf]
    %v156 = vld [vmem:[#allocation5 + $0x34] sm:$0xf]
    %v157 = vld [vmem:[#allocation5 + $0x38] sm:$0xf]
    %v158 = vld [vmem:[#allocation5 + $0x3c] sm:$0xf]
    %v159 = vld [vmem:[#allocation5 + $0x40] sm:$0xf]
    %v160 = vld [vmem:[#allocation5 + $0x44] sm:$0xf]
    %v161 = vld [vmem:[#allocation5 + $0x48] sm:$0xf]
    %v162 = vld [vmem:[#allocation5 + $0x4c] sm:$0xf]
    %v163 = vld [vmem:[#allocation5 + $0x50] sm:$0xf]
    %v164 = vld [vmem:[#allocation5 + $0x54] sm:$0xf]
    %v165 = vld [vmem:[#allocation5 + $0x58] sm:$0xf]
    %v166 = vld [vmem:[#allocation5 + $0x5c] sm:$0xf]
    %v167 = vld [vmem:[#allocation5 + $0x60] sm:$0xf]
    %v168 = vld [vmem:[#allocation5 + $0x64] sm:$0xf]
    %v169 = vld [vmem:[#allocation5 + $0x68] sm:$0xf]
    %v170 = vld [vmem:[#allocation5 + $0x6c] sm:$0xf]
    %v171 = vld [vmem:[#allocation5 + $0x70] sm:$0xf]
    %v172 = vld [vmem:[#allocation5 + $0x74] sm:$0xf]
    %v173 = vld [vmem:[#allocation5 + $0x78] sm:$0xf]
    %v174 = vld [vmem:[#allocation5 + $0x7c] sm:$0xf]
    %v175 = vld [vmem:[%s2] sm:$0x1]
    %v177 = vlaneseq
    %v178 = vshrl.u32 %v177, 7
    %v179 = vsub.s32 0, %v178
    %v180 = vrot.slane %v175, %v179
    %v184 = vunpack.c.l.b16 %v141
    %v185 = vunpack.c.h.b16 %v141
    %v186 = vunpack.c.l.b16 %v142
    %v187 = vunpack.c.h.b16 %v142
    %v188 = vpack.c.b16 %v186, %v184
    %v189 = vpack.c.b16 %v187, %v185
    %v224 = vunpack.c.l.b16 %v143
    %v225 = vunpack.c.l.b16 %v144
    %v226 = vunpack.c.l.b16 %v145
    %v227 = vunpack.c.l.b16 %v146
    %v228 = vunpack.c.l.b16 %v147
    %v229 = vunpack.c.l.b16 %v148
    %v230 = vunpack.c.l.b16 %v149
    %v231 = vunpack.c.l.b16 %v150
    %v232 = vunpack.c.l.b16 %v151
    %v233 = vunpack.c.l.b16 %v152
    %v234 = vunpack.c.l.b16 %v153
    %v235 = vunpack.c.l.b16 %v154
    %v236 = vunpack.c.l.b16 %v155
    %v237 = vunpack.c.l.b16 %v156
    %v238 = vunpack.c.l.b16 %v157
    %v239 = vunpack.c.l.b16 %v158
    %v240 = vunpack.c.l.b16 %v159
    %v241 = vunpack.c.l.b16 %v160
    %v242 = vunpack.c.l.b16 %v161
    %v243 = vunpack.c.l.b16 %v162
    %v244 = vunpack.c.l.b16 %v163
    %v245 = vunpack.c.l.b16 %v164
    %v246 = vunpack.c.l.b16 %v165
    %v247 = vunpack.c.l.b16 %v166
    %v248 = vunpack.c.l.b16 %v167
    %v249 = vunpack.c.l.b16 %v168
    %v250 = vunpack.c.l.b16 %v169
    %v251 = vunpack.c.l.b16 %v170
    %v252 = vunpack.c.l.b16 %v171
    %v253 = vunpack.c.l.b16 %v172
    %v254 = vunpack.c.l.b16 %v173
    %v255 = vunpack.c.l.b16 %v174
    %v256 = vpack.c.b16 %v225, %v224
    %v257 = vpack.c.b16 %v227, %v226
    %v258 = vpack.c.b16 %v229, %v228
    %v259 = vpack.c.b16 %v231, %v230
    %v260 = vpack.c.b16 %v233, %v232
    %v261 = vpack.c.b16 %v235, %v234
    %v262 = vpack.c.b16 %v237, %v236
    %v263 = vpack.c.b16 %v239, %v238
    %v264 = vpack.c.b16 %v241, %v240
    %v265 = vpack.c.b16 %v243, %v242
    %v266 = vpack.c.b16 %v245, %v244
    %v267 = vpack.c.b16 %v247, %v246
    %v268 = vpack.c.b16 %v249, %v248
    %v269 = vpack.c.b16 %v251, %v250
    %v270 = vpack.c.b16 %v253, %v252
    %v271 = vpack.c.b16 %v255, %v254
    %288 = vmatprep.subr.bf16.mxu0 0
    %289 = vmatpush1.bf16.msra.mxu0 %v256
    %290 = vmatprep.subr.bf16.mxu0 0
    %291 = vmatpush1.bf16.msra.mxu0 %v257
    %292 = vmatprep.subr.bf16.mxu0 0
    %293 = vmatpush1.bf16.msra.mxu0 %v258
    %294 = vmatprep.subr.bf16.mxu0 0
    %295 = vmatpush1.bf16.msra.mxu0 %v259
    %296 = vmatprep.subr.bf16.mxu0 0
    %297 = vmatpush1.bf16.msra.mxu0 %v260
    %298 = vmatprep.subr.bf16.mxu0 0
    %299 = vmatpush1.bf16.msra.mxu0 %v261
    %300 = vmatprep.subr.bf16.mxu0 0
    %301 = vmatpush1.bf16.msra.mxu0 %v262
    %302 = vmatprep.subr.bf16.mxu0 0
    %303 = vmatpush1.bf16.msra.mxu0 %v263
    %304 = vmatprep.subr.bf16.mxu0 0
    %305 = vmatpush1.bf16.msra.mxu0 %v264
    %306 = vmatprep.subr.bf16.mxu0 0
    %307 = vmatpush1.bf16.msra.mxu0 %v265
    %308 = vmatprep.subr.bf16.mxu0 0
    %309 = vmatpush1.bf16.msra.mxu0 %v266
    %310 = vmatprep.subr.bf16.mxu0 0
    %311 = vmatpush1.bf16.msra.mxu0 %v267
    %312 = vmatprep.subr.bf16.mxu0 0
    %313 = vmatpush1.bf16.msra.mxu0 %v268
    %314 = vmatprep.subr.bf16.mxu0 0
    %315 = vmatpush1.bf16.msra.mxu0 %v269
    %316 = vmatprep.subr.bf16.mxu0 0
    %317 = vmatpush1.bf16.msra.mxu0 %v270
    %318 = vmatprep.subr.bf16.mxu0 0
    %319 = vmatpush1.bf16.msra.mxu0 %v271
    %320 = vmatprep.mubr.bf16.mxu0 %v189
    %321 = vmatmul.mubr.bf16.gmra.mrb[0].mxu0 %v188
    %v322 = vpop.f32.mrb[0].mxu0
    %v323 = vadd.f32 %v180, %v322
    %v324 = vpop.f32.mrb[0].mxu0
    %v325 = vpop.f32.mrb[0].mxu0
    %v326 = vadd.f32 %v180, %v325
    %v327 = vpop.f32.mrb[0].mxu0
    %328 = vdwg.mxu0
    %v329 = vmax.f32 %v323, 0.0
    %v330 = vmax.f32 %v326, 0.0
    %v331 = vpack.c.bf16 %v330, %v329
    %v332 = vld [vmem:[#allocation7] sm:$0xf]
    %v333 = vld [vmem:[#allocation7 + $0x4] sm:$0xf]
    %v334 = vld [vmem:[#allocation7 + $0x8] sm:$0xf]
    %v335 = vld [vmem:[#allocation7 + $0xc] sm:$0xf]
    %v336 = vld [vmem:[#allocation7 + $0x10] sm:$0xf]
    %v337 = vld [vmem:[#allocation7 + $0x14] sm:$0xf]
    %v338 = vld [vmem:[#allocation7 + $0x18] sm:$0xf]
    %v339 = vld [vmem:[#allocation7 + $0x1c] sm:$0xf]
    %v340 = vld [vmem:[#allocation7 + $0x20] sm:$0xf]
    %v341 = vld [vmem:[#allocation7 + $0x24] sm:$0xf]
    %v342 = vld [vmem:[#allocation7 + $0x28] sm:$0xf]
    %v343 = vld [vmem:[#allocation7 + $0x2c] sm:$0xf]
    %v344 = vld [vmem:[#allocation7 + $0x30] sm:$0xf]
    %v345 = vld [vmem:[#allocation7 + $0x34] sm:$0xf]
    %v346 = vld [vmem:[#allocation7 + $0x38] sm:$0xf]
    %v347 = vld [vmem:[#allocation7 + $0x3c] sm:$0xf]
    %v348 = vld [vmem:[%s4] sm:$0x1]
    %v350 = vlaneseq
    %v351 = vshrl.u32 %v350, 7
    %v352 = vsub.s32 0, %v351
    %v353 = vrot.slane %v348, %v352
    %v371 = vunpack.c.l.b16 %v332
    %v372 = vunpack.c.l.b16 %v333
    %v373 = vunpack.c.l.b16 %v334
    %v374 = vunpack.c.l.b16 %v335
    %v375 = vunpack.c.l.b16 %v336
    %v376 = vunpack.c.l.b16 %v337
    %v377 = vunpack.c.l.b16 %v338
    %v378 = vunpack.c.l.b16 %v339
    %v379 = vunpack.c.l.b16 %v340
    %v380 = vunpack.c.l.b16 %v341
    %v381 = vunpack.c.l.b16 %v342
    %v382 = vunpack.c.l.b16 %v343
    %v383 = vunpack.c.l.b16 %v344
    %v384 = vunpack.c.l.b16 %v345
    %v385 = vunpack.c.l.b16 %v346
    %v386 = vunpack.c.l.b16 %v347
    %v387 = vpack.c.b16 %v372, %v371
    %v388 = vpack.c.b16 %v374, %v373
    %v389 = vpack.c.b16 %v376, %v375
    %v390 = vpack.c.b16 %v378, %v377
    %v391 = vpack.c.b16 %v380, %v379
    %v392 = vpack.c.b16 %v382, %v381
    %v393 = vpack.c.b16 %v384, %v383
    %v394 = vpack.c.b16 %v386, %v385
    %403 = vmatprep.subr.bf16.mxu0 0
    %404 = vmatpush1.bf16.msra.mxu0 %v387
    %405 = vmatprep.subr.bf16.mxu0 0
    %406 = vmatpush1.bf16.msra.mxu0 %v388
    %407 = vmatprep.subr.bf16.mxu0 0
    %408 = vmatpush1.bf16.msra.mxu0 %v389
    %409 = vmatprep.subr.bf16.mxu0 0
    %410 = vmatpush1.bf16.msra.mxu0 %v390
    %411 = vmatprep.subr.bf16.mxu0 0
    %412 = vmatpush1.bf16.msra.mxu0 %v391
    %413 = vmatprep.subr.bf16.mxu0 0
    %414 = vmatpush1.bf16.msra.mxu0 %v392
    %415 = vmatprep.subr.bf16.mxu0 0
    %416 = vmatpush1.bf16.msra.mxu0 %v393
    %417 = vmatprep.subr.bf16.mxu0 0
    %418 = vmatpush1.bf16.msra.mxu0 %v394
    %419 = vmatprep.subr.bf16.mxu0 0
    %420 = vmatpush1.bf16.msra.mxu0 0
    %421 = vmatprep.subr.bf16.mxu0 0
    %422 = vmatpush1.bf16.msra.mxu0 0
    %423 = vmatprep.subr.bf16.mxu0 0
    %424 = vmatpush1.bf16.msra.mxu0 0
    %425 = vmatprep.subr.bf16.mxu0 0
    %426 = vmatpush1.bf16.msra.mxu0 0
    %427 = vmatprep.subr.bf16.mxu0 0
    %428 = vmatpush1.bf16.msra.mxu0 0
    %429 = vmatprep.subr.bf16.mxu0 0
    %430 = vmatpush1.bf16.msra.mxu0 0
    %431 = vmatprep.subr.bf16.mxu0 0
    %432 = vmatpush1.bf16.msra.mxu0 0
    %433 = vmatprep.subr.bf16.mxu0 0
    %434 = vmatpush1.bf16.msra.mxu0 0
    %435 = vmatprep.mubr.bf16.mxu0 0
    %436 = vmatmul.mubr.bf16.gmra.mrb[0].mxu0 %v331
    %v437 = vpop.f32.mrb[0].mxu0
    %v438 = vadd.f32 %v353, %v437
    %v439 = vpop.f32.mrb[0].mxu0
    %v440 = vpop.f32.mrb[0].mxu0
    %v441 = vadd.f32 %v353, %v440
    %v442 = vpop.f32.mrb[0].mxu0
    %443 = vdwg.mxu0
    %v444 = vmax.f32 %v438, 0.0
    %v445 = vmax.f32 %v441, 0.0
    %v446 = vpack.c.bf16 %v445, %v444
    %v447 = vld [vmem:[#allocation8] sm:$0xf]
    %v448 = vld [vmem:[#allocation8 + $0x4] sm:$0xf]
    %v449 = vld [vmem:[#allocation8 + $0x8] sm:$0xf]
    %v450 = vld [vmem:[#allocation8 + $0xc] sm:$0xf]
    %v451 = vld [vmem:[#allocation8 + $0x10] sm:$0xf]
    %v452 = vld [vmem:[#allocation8 + $0x14] sm:$0xf]
    %v453 = vld [vmem:[#allocation8 + $0x18] sm:$0xf]
    %v454 = vld [vmem:[#allocation8 + $0x1c] sm:$0xf]
    %v455 = vld [vmem:[#allocation8 + $0x20] sm:$0xf]
    %v456 = vld [vmem:[#allocation8 + $0x24] sm:$0xf]
    %v457 = vld [vmem:[#allocation8 + $0x28] sm:$0xf]
    %v458 = vld [vmem:[#allocation8 + $0x2c] sm:$0xf]
    %v459 = vld [vmem:[#allocation8 + $0x30] sm:$0xf]
    %v460 = vld [vmem:[#allocation8 + $0x34] sm:$0xf]
    %v461 = vld [vmem:[#allocation8 + $0x38] sm:$0xf]
    %v462 = vld [vmem:[#allocation8 + $0x3c] sm:$0xf]
    %v463 = vld [vmem:[%s6] sm:$0x1]
    %v465 = vlaneseq
    %v466 = vshrl.u32 %v465, 7
    %v467 = vsub.s32 0, %v466
    %v468 = vrot.slane %v463, %v467
    %v486 = vunpack.c.l.b16 %v447
    %v487 = vunpack.c.l.b16 %v448
    %v488 = vunpack.c.l.b16 %v449
    %v489 = vunpack.c.l.b16 %v450
    %v490 = vunpack.c.l.b16 %v451
    %v491 = vunpack.c.l.b16 %v452
    %v492 = vunpack.c.l.b16 %v453
    %v493 = vunpack.c.l.b16 %v454
    %v494 = vunpack.c.l.b16 %v455
    %v495 = vunpack.c.l.b16 %v456
    %v496 = vunpack.c.l.b16 %v457
    %v497 = vunpack.c.l.b16 %v458
    %v498 = vunpack.c.l.b16 %v459
    %v499 = vunpack.c.l.b16 %v460
    %v500 = vunpack.c.l.b16 %v461
    %v501 = vunpack.c.l.b16 %v462
    %v502 = vpack.c.b16 %v487, %v486
    %v503 = vpack.c.b16 %v489, %v488
    %v504 = vpack.c.b16 %v491, %v490
    %v505 = vpack.c.b16 %v493, %v492
    %v506 = vpack.c.b16 %v495, %v494
    %v507 = vpack.c.b16 %v497, %v496
    %v508 = vpack.c.b16 %v499, %v498
    %v509 = vpack.c.b16 %v501, %v500
    %518 = vmatprep.subr.bf16.mxu0 0
    %519 = vmatpush1.bf16.msra.mxu0 %v502
    %520 = vmatprep.subr.bf16.mxu0 0
    %521 = vmatpush1.bf16.msra.mxu0 %v503
    %522 = vmatprep.subr.bf16.mxu0 0
    %523 = vmatpush1.bf16.msra.mxu0 %v504
    %524 = vmatprep.subr.bf16.mxu0 0
    %525 = vmatpush1.bf16.msra.mxu0 %v505
    %526 = vmatprep.subr.bf16.mxu0 0
    %527 = vmatpush1.bf16.msra.mxu0 %v506
    %528 = vmatprep.subr.bf16.mxu0 0
    %529 = vmatpush1.bf16.msra.mxu0 %v507
    %530 = vmatprep.subr.bf16.mxu0 0
    %531 = vmatpush1.bf16.msra.mxu0 %v508
    %532 = vmatprep.subr.bf16.mxu0 0
    %533 = vmatpush1.bf16.msra.mxu0 %v509
    %534 = vmatprep.subr.bf16.mxu0 0
    %535 = vmatpush1.bf16.msra.mxu0 0
    %536 = vmatprep.subr.bf16.mxu0 0
    %537 = vmatpush1.bf16.msra.mxu0 0
    %538 = vmatprep.subr.bf16.mxu0 0
    %539 = vmatpush1.bf16.msra.mxu0 0
    %540 = vmatprep.subr.bf16.mxu0 0
    %541 = vmatpush1.bf16.msra.mxu0 0
    %542 = vmatprep.subr.bf16.mxu0 0
    %543 = vmatpush1.bf16.msra.mxu0 0
    %544 = vmatprep.subr.bf16.mxu0 0
    %545 = vmatpush1.bf16.msra.mxu0 0
    %546 = vmatprep.subr.bf16.mxu0 0
    %547 = vmatpush1.bf16.msra.mxu0 0
    %548 = vmatprep.subr.bf16.mxu0 0
    %549 = vmatpush1.bf16.msra.mxu0 0
    %550 = vmatprep.mubr.bf16.mxu0 0
    %551 = vmatmul.mubr.bf16.gmra.mrb[0].mxu0 %v446
    %v552 = vpop.f32.mrb[0].mxu0
    %v553 = vadd.f32 %v468, %v552
    %v554 = vpop.f32.mrb[0].mxu0
    %v555 = vpop.f32.mrb[0].mxu0
    %v556 = vadd.f32 %v468, %v555
    %v557 = vpop.f32.mrb[0].mxu0
    %558 = vdwg.mxu0
    %v559 = vadd.f32 %v323, %v553
    %v560 = vadd.f32 %v326, %v556
    %v561 = vmax.f32 %v559, 0.0
    %v562 = vmax.f32 %v560, 0.0
    %v563 = vpack.c.bf16 %v562, %v561
    %v564 = vld [vmem:[#allocation10] sm:$0xf]
    %v565 = vld [vmem:[#allocation10 + $0x4] sm:$0xf]
    %v566 = vld [vmem:[#allocation10 + $0x8] sm:$0xf]
    %v567 = vld [vmem:[#allocation10 + $0xc] sm:$0xf]
    %v568 = vld [vmem:[#allocation10 + $0x10] sm:$0xf]
    %v569 = vld [vmem:[#allocation10 + $0x14] sm:$0xf]
    %v570 = vld [vmem:[#allocation10 + $0x18] sm:$0xf]
    %v571 = vld [vmem:[#allocation10 + $0x1c] sm:$0xf]
    %v572 = vld [vmem:[#allocation10 + $0x20] sm:$0xf]
    %v573 = vld [vmem:[#allocation10 + $0x24] sm:$0xf]
    %v574 = vld [vmem:[#allocation10 + $0x28] sm:$0xf]
    %v575 = vld [vmem:[#allocation10 + $0x2c] sm:$0xf]
    %v576 = vld [vmem:[#allocation10 + $0x30] sm:$0xf]
    %v577 = vld [vmem:[#allocation10 + $0x34] sm:$0xf]
    %v578 = vld [vmem:[#allocation10 + $0x38] sm:$0xf]
    %v579 = vld [vmem:[#allocation10 + $0x3c] sm:$0xf]
    %v580 = vld [vmem:[%s8] sm:$0x1]
    %v582 = vlaneseq
    %v583 = vshrl.u32 %v582, 7
    %v584 = vsub.s32 0, %v583
    %v585 = vrot.slane %v580, %v584
    %v603 = vunpack.c.l.b16 %v564
    %v604 = vunpack.c.l.b16 %v565
    %v605 = vunpack.c.l.b16 %v566
    %v606 = vunpack.c.l.b16 %v567
    %v607 = vunpack.c.l.b16 %v568
    %v608 = vunpack.c.l.b16 %v569
    %v609 = vunpack.c.l.b16 %v570
    %v610 = vunpack.c.l.b16 %v571
    %v611 = vunpack.c.l.b16 %v572
    %v612 = vunpack.c.l.b16 %v573
    %v613 = vunpack.c.l.b16 %v574
    %v614 = vunpack.c.l.b16 %v575
    %v615 = vunpack.c.l.b16 %v576
    %v616 = vunpack.c.l.b16 %v577
    %v617 = vunpack.c.l.b16 %v578
    %v618 = vunpack.c.l.b16 %v579
    %v619 = vpack.c.b16 %v604, %v603
    %v620 = vpack.c.b16 %v606, %v605
    %v621 = vpack.c.b16 %v608, %v607
    %v622 = vpack.c.b16 %v610, %v609
    %v623 = vpack.c.b16 %v612, %v611
    %v624 = vpack.c.b16 %v614, %v613
    %v625 = vpack.c.b16 %v616, %v615
    %v626 = vpack.c.b16 %v618, %v617
    %635 = vmatprep.subr.bf16.mxu0 0
    %636 = vmatpush1.bf16.msra.mxu0 %v619
    %637 = vmatprep.subr.bf16.mxu0 0
    %638 = vmatpush1.bf16.msra.mxu0 %v620
    %639 = vmatprep.subr.bf16.mxu0 0
    %640 = vmatpush1.bf16.msra.mxu0 %v621
    %641 = vmatprep.subr.bf16.mxu0 0
    %642 = vmatpush1.bf16.msra.mxu0 %v622
    %643 = vmatprep.subr.bf16.mxu0 0
    %644 = vmatpush1.bf16.msra.mxu0 %v623
    %645 = vmatprep.subr.bf16.mxu0 0
    %646 = vmatpush1.bf16.msra.mxu0 %v624
    %647 = vmatprep.subr.bf16.mxu0 0
    %648 = vmatpush1.bf16.msra.mxu0 %v625
    %649 = vmatprep.subr.bf16.mxu0 0
    %650 = vmatpush1.bf16.msra.mxu0 %v626
    %651 = vmatprep.subr.bf16.mxu0 0
    %652 = vmatpush1.bf16.msra.mxu0 0
    %653 = vmatprep.subr.bf16.mxu0 0
    %654 = vmatpush1.bf16.msra.mxu0 0
    %655 = vmatprep.subr.bf16.mxu0 0
    %656 = vmatpush1.bf16.msra.mxu0 0
    %657 = vmatprep.subr.bf16.mxu0 0
    %658 = vmatpush1.bf16.msra.mxu0 0
    %659 = vmatprep.subr.bf16.mxu0 0
    %660 = vmatpush1.bf16.msra.mxu0 0
    %661 = vmatprep.subr.bf16.mxu0 0
    %662 = vmatpush1.bf16.msra.mxu0 0
    %663 = vmatprep.subr.bf16.mxu0 0
    %664 = vmatpush1.bf16.msra.mxu0 0
    %665 = vmatprep.subr.bf16.mxu0 0
    %666 = vmatpush1.bf16.msra.mxu0 0
    %667 = vmatprep.mubr.bf16.mxu0 0
    %668 = vmatmul.mubr.bf16.gmra.mrb[0].mxu0 %v563
    %v669 = vpop.f32.mrb[0].mxu0
    %v670 = vadd.f32 %v585, %v669
    %v671 = vpop.f32.mrb[0].mxu0
    %v672 = vpop.f32.mrb[0].mxu0
    %v673 = vadd.f32 %v585, %v672
    %v674 = vpop.f32.mrb[0].mxu0
    %675 = vdwg.mxu0
    %v676 = vmax.f32 %v670, 0.0
    %v677 = vmax.f32 %v673, 0.0
    %v678 = vpack.c.bf16 %v677, %v676
    %v679 = vld [vmem:[#allocation11] sm:$0xf]
    %v680 = vld [vmem:[#allocation11 + $0x4] sm:$0xf]
    %v681 = vld [vmem:[#allocation11 + $0x8] sm:$0xf]
    %v682 = vld [vmem:[#allocation11 + $0xc] sm:$0xf]
    %v683 = vld [vmem:[#allocation11 + $0x10] sm:$0xf]
    %v684 = vld [vmem:[#allocation11 + $0x14] sm:$0xf]
    %v685 = vld [vmem:[#allocation11 + $0x18] sm:$0xf]
    %v686 = vld [vmem:[#allocation11 + $0x1c] sm:$0xf]
    %v687 = vld [vmem:[#allocation11 + $0x20] sm:$0xf]
    %v688 = vld [vmem:[#allocation11 + $0x24] sm:$0xf]
    %v689 = vld [vmem:[#allocation11 + $0x28] sm:$0xf]
    %v690 = vld [vmem:[#allocation11 + $0x2c] sm:$0xf]
    %v691 = vld [vmem:[#allocation11 + $0x30] sm:$0xf]
    %v692 = vld [vmem:[#allocation11 + $0x34] sm:$0xf]
    %v693 = vld [vmem:[#allocation11 + $0x38] sm:$0xf]
    %v694 = vld [vmem:[#allocation11 + $0x3c] sm:$0xf]
    %v695 = vld [vmem:[%s10] sm:$0x1]
    %v697 = vlaneseq
    %v698 = vshrl.u32 %v697, 7
    %v699 = vsub.s32 0, %v698
    %v700 = vrot.slane %v695, %v699
    %v718 = vunpack.c.l.b16 %v679
    %v719 = vunpack.c.l.b16 %v680
    %v720 = vunpack.c.l.b16 %v681
    %v721 = vunpack.c.l.b16 %v682
    %v722 = vunpack.c.l.b16 %v683
    %v723 = vunpack.c.l.b16 %v684
    %v724 = vunpack.c.l.b16 %v685
    %v725 = vunpack.c.l.b16 %v686
    %v726 = vunpack.c.l.b16 %v687
    %v727 = vunpack.c.l.b16 %v688
    %v728 = vunpack.c.l.b16 %v689
    %v729 = vunpack.c.l.b16 %v690
    %v730 = vunpack.c.l.b16 %v691
    %v731 = vunpack.c.l.b16 %v692
    %v732 = vunpack.c.l.b16 %v693
    %v733 = vunpack.c.l.b16 %v694
    %v734 = vpack.c.b16 %v719, %v718
    %v735 = vpack.c.b16 %v721, %v720
    %v736 = vpack.c.b16 %v723, %v722
    %v737 = vpack.c.b16 %v725, %v724
    %v738 = vpack.c.b16 %v727, %v726
    %v739 = vpack.c.b16 %v729, %v728
    %v740 = vpack.c.b16 %v731, %v730
    %v741 = vpack.c.b16 %v733, %v732
    %750 = vmatprep.subr.bf16.mxu0 0
    %751 = vmatpush1.bf16.msra.mxu0 %v734
    %752 = vmatprep.subr.bf16.mxu0 0
    %753 = vmatpush1.bf16.msra.mxu0 %v735
    %754 = vmatprep.subr.bf16.mxu0 0
    %755 = vmatpush1.bf16.msra.mxu0 %v736
    %756 = vmatprep.subr.bf16.mxu0 0
    %757 = vmatpush1.bf16.msra.mxu0 %v737
    %758 = vmatprep.subr.bf16.mxu0 0
    %759 = vmatpush1.bf16.msra.mxu0 %v738
    %760 = vmatprep.subr.bf16.mxu0 0
    %761 = vmatpush1.bf16.msra.mxu0 %v739
    %762 = vmatprep.subr.bf16.mxu0 0
    %763 = vmatpush1.bf16.msra.mxu0 %v740
    %764 = vmatprep.subr.bf16.mxu0 0
    %765 = vmatpush1.bf16.msra.mxu0 %v741
    %766 = vmatprep.subr.bf16.mxu0 0
    %767 = vmatpush1.bf16.msra.mxu0 0
    %768 = vmatprep.subr.bf16.mxu0 0
    %769 = vmatpush1.bf16.msra.mxu0 0
    %770 = vmatprep.subr.bf16.mxu0 0
    %771 = vmatpush1.bf16.msra.mxu0 0
    %772 = vmatprep.subr.bf16.mxu0 0
    %773 = vmatpush1.bf16.msra.mxu0 0
    %774 = vmatprep.subr.bf16.mxu0 0
    %775 = vmatpush1.bf16.msra.mxu0 0
    %776 = vmatprep.subr.bf16.mxu0 0
    %777 = vmatpush1.bf16.msra.mxu0 0
    %778 = vmatprep.subr.bf16.mxu0 0
    %779 = vmatpush1.bf16.msra.mxu0 0
    %780 = vmatprep.subr.bf16.mxu0 0
    %781 = vmatpush1.bf16.msra.mxu0 0
    %782 = vmatprep.mubr.bf16.mxu0 0
    %783 = vmatmul.mubr.bf16.gmra.mrb[0].mxu0 %v678
    %v784 = vpop.f32.mrb[0].mxu0
    %v785 = vadd.f32 %v700, %v784
    %v786 = vpop.f32.mrb[0].mxu0
    %v787 = vpop.f32.mrb[0].mxu0
    %v788 = vadd.f32 %v700, %v787
    %v789 = vpop.f32.mrb[0].mxu0
    %790 = vdwg.mxu0
    %v791 = vadd.f32 %v559, %v785
    %v792 = vadd.f32 %v560, %v788
    %v793 = vmax.f32 %v791, 0.0
    %v794 = vmax.f32 %v792, 0.0
    %v795 = vpack.c.bf16 %v794, %v793
    %v796 = vld [vmem:[#allocation13] sm:$0xf]
    %v797 = vld [vmem:[#allocation13 + $0x4] sm:$0xf]
    %v798 = vld [vmem:[#allocation13 + $0x8] sm:$0xf]
    %v799 = vld [vmem:[#allocation13 + $0xc] sm:$0xf]
    %v800 = vld [vmem:[#allocation13 + $0x10] sm:$0xf]
    %v801 = vld [vmem:[#allocation13 + $0x14] sm:$0xf]
    %v802 = vld [vmem:[#allocation13 + $0x18] sm:$0xf]
    %v803 = vld [vmem:[#allocation13 + $0x1c] sm:$0xf]
    %v804 = vld [vmem:[#allocation13 + $0x20] sm:$0xf]
    %v805 = vld [vmem:[#allocation13 + $0x24] sm:$0xf]
    %v806 = vld [vmem:[#allocation13 + $0x28] sm:$0xf]
    %v807 = vld [vmem:[#allocation13 + $0x2c] sm:$0xf]
    %v808 = vld [vmem:[#allocation13 + $0x30] sm:$0xf]
    %v809 = vld [vmem:[#allocation13 + $0x34] sm:$0xf]
    %v810 = vld [vmem:[#allocation13 + $0x38] sm:$0xf]
    %v811 = vld [vmem:[#allocation13 + $0x3c] sm:$0xf]
    %v812 = vld [vmem:[%s12] sm:$0x1]
    %v814 = vlaneseq
    %v815 = vshrl.u32 %v814, 7
    %v816 = vsub.s32 0, %v815
    %v817 = vrot.slane %v812, %v816
    %v835 = vunpack.c.l.b16 %v796
    %v836 = vunpack.c.l.b16 %v797
    %v837 = vunpack.c.l.b16 %v798
    %v838 = vunpack.c.l.b16 %v799
    %v839 = vunpack.c.l.b16 %v800
    %v840 = vunpack.c.l.b16 %v801
    %v841 = vunpack.c.l.b16 %v802
    %v842 = vunpack.c.l.b16 %v803
    %v843 = vunpack.c.l.b16 %v804
    %v844 = vunpack.c.l.b16 %v805
    %v845 = vunpack.c.l.b16 %v806
    %v846 = vunpack.c.l.b16 %v807
    %v847 = vunpack.c.l.b16 %v808
    %v848 = vunpack.c.l.b16 %v809
    %v849 = vunpack.c.l.b16 %v810
    %v850 = vunpack.c.l.b16 %v811
    %v851 = vpack.c.b16 %v836, %v835
    %v852 = vpack.c.b16 %v838, %v837
    %v853 = vpack.c.b16 %v840, %v839
    %v854 = vpack.c.b16 %v842, %v841
    %v855 = vpack.c.b16 %v844, %v843
    %v856 = vpack.c.b16 %v846, %v845
    %v857 = vpack.c.b16 %v848, %v847
    %v858 = vpack.c.b16 %v850, %v849
    %867 = vmatprep.subr.bf16.mxu0 0
    %868 = vmatpush1.bf16.msra.mxu0 %v851
    %869 = vmatprep.subr.bf16.mxu0 0
    %870 = vmatpush1.bf16.msra.mxu0 %v852
    %871 = vmatprep.subr.bf16.mxu0 0
    %872 = vmatpush1.bf16.msra.mxu0 %v853
    %873 = vmatprep.subr.bf16.mxu0 0
    %874 = vmatpush1.bf16.msra.mxu0 %v854
    %875 = vmatprep.subr.bf16.mxu0 0
    %876 = vmatpush1.bf16.msra.mxu0 %v855
    %877 = vmatprep.subr.bf16.mxu0 0
    %878 = vmatpush1.bf16.msra.mxu0 %v856
    %879 = vmatprep.subr.bf16.mxu0 0
    %880 = vmatpush1.bf16.msra.mxu0 %v857
    %881 = vmatprep.subr.bf16.mxu0 0
    %882 = vmatpush1.bf16.msra.mxu0 %v858
    %883 = vmatprep.subr.bf16.mxu0 0
    %884 = vmatpush1.bf16.msra.mxu0 0
    %885 = vmatprep.subr.bf16.mxu0 0
    %886 = vmatpush1.bf16.msra.mxu0 0
    %887 = vmatprep.subr.bf16.mxu0 0
    %888 = vmatpush1.bf16.msra.mxu0 0
    %889 = vmatprep.subr.bf16.mxu0 0
    %890 = vmatpush1.bf16.msra.mxu0 0
    %891 = vmatprep.subr.bf16.mxu0 0
    %892 = vmatpush1.bf16.msra.mxu0 0
    %893 = vmatprep.subr.bf16.mxu0 0
    %894 = vmatpush1.bf16.msra.mxu0 0
    %895 = vmatprep.subr.bf16.mxu0 0
    %896 = vmatpush1.bf16.msra.mxu0 0
    %897 = vmatprep.subr.bf16.mxu0 0
    %898 = vmatpush1.bf16.msra.mxu0 0
    %899 = vmatprep.mubr.bf16.mxu0 0
    %900 = vmatmul.mubr.bf16.gmra.mrb[0].mxu0 %v795
    %v901 = vpop.f32.mrb[0].mxu0
    %v902 = vadd.f32 %v817, %v901
    %v903 = vpop.f32.mrb[0].mxu0
    %v904 = vpop.f32.mrb[0].mxu0
    %v905 = vadd.f32 %v817, %v904
    %v906 = vpop.f32.mrb[0].mxu0
    %907 = vdwg.mxu0
    %908 = vst [vmem:[#allocation14] sm:$0xff] %v902
    %909 = vst [vmem:[#allocation14 + $0x8] sm:$0xff] %v905
    // Predicated region
    $region82: #{tpu_custom_call.1} parent=1 // pred_check
      _
    $region83: #{tpu_custom_call.1} parent=1 // pred_check_branch
      %911 = sbr.rel (0) target = $region85
    $region84: #{tpu_custom_call.1} parent=1 // pred_region
      %s913 = ssub.s32 256, 256
      %914 = vsyncadd [#allocation4], %s913
      %s915 = sshll.u32 [#allocation14], 4
      %s916 = int_to_ptr.vmem [resolvable:$true] %s915
      %921 = dma.vmem_to_hbm [thread:$0]  %s916, 256, %s13, [#allocation4], 128, 128, 8
    $region85: #{tpu_custom_call.1} parent=1 // pred_fallthru
      _
    // Predicated region
    $region86: #{tpu_custom_call.1} parent=1 // pred_check
      _
    $region87: #{tpu_custom_call.1} parent=1 // pred_check_branch
      %923 = sbr.rel (0) target = $region89
    $region88: #{tpu_custom_call.1} parent=1 // pred_region
      %924 = dma.done [#allocation4], 256
    $region89: #{tpu_custom_call.1} parent=1 // pred_fallthru
      _
    %925 = vsyncpa [#allocation3], 1
    %926 = vsyncpa [#allocation6], 1
    %927 = vsyncpa [#allocation9], 1
    %928 = vsyncpa [#allocation12], 1
    %929 = vsyncpa [#allocation4], 1

</llo_original>
